<compile_context>
chip_gen: v7x
topology: tpu7x:2x2x1
jax: 0.10.0
libtpu: 0.0.40
codegen_flags: <defaults>
</compile_context>

<pallas_src>
import functools

import jax
import jax.numpy as jnp
from jax import lax
from jax.experimental import pallas as pl
from jax.experimental.pallas import tpu as pltpu


def _contrastive_kernel(xi_ref, xj_ref, rowsum_ref, match_ref, *, tau, normalize):
    """One (row-tile i, col-tile j) grid step.

    xi_ref     : (TB, D) tile of xi   (rows i*TB : (i+1)*TB)
    xj_ref     : (TB, D) tile of xj   (rows j*TB : (j+1)*TB)
    rowsum_ref : (TB, 1) resident across j; accumulates sum_j exp(sim/tau)
    match_ref  : (TB, 1) resident across j; written once, on the diagonal tile
    """
    i = pl.program_id(0)
    j = pl.program_id(1)

    xi = xi_ref[...].astype(jnp.float32)
    xj = xj_ref[...].astype(jnp.float32)

    # s[m, n] = <xi_m, xj_n>  — transposed-RHS contraction, no explicit .T
    s = lax.dot_general(xi, xj, (((1,), (1,)), ((), ())),
                        preferred_element_type=jnp.float32)              # (TB, TB)

    if normalize:
        ni = jnp.sqrt(jnp.sum(xi * xi, axis=1, keepdims=True))           # (TB, 1)
        nj = jnp.sqrt(jnp.sum(xj * xj, axis=1, keepdims=True))           # (TB, 1)
        # outer product ||xi_m|| * ||xj_n|| as a K=1 matmul (avoids a transpose)
        denom = lax.dot_general(ni, nj, (((1,), (1,)), ((), ())),
                                preferred_element_type=jnp.float32)      # (TB, TB)
        s = s / jnp.maximum(denom, 1e-16)                                # clamp(min=1e-16)

    p = jnp.exp(s / tau)                                                 # (TB, TB)

    @pl.when(j == 0)
    def _():
        rowsum_ref[...] = jnp.zeros_like(rowsum_ref)

    rowsum_ref[...] += jnp.sum(p, axis=1, keepdims=True)                 # (TB, 1)

    # The "positive pair" similarity uses identically-indexed rows of xi and
    # xj; both rows are present only in the diagonal tile j == i.
    @pl.when(j == i)
    def _():
        dm = jnp.sum(xi * xj, axis=1, keepdims=True)                     # (TB, 1)
        if normalize:
            dm = dm / (ni * nj)          # unclamped, as in the PyTorch code
        match_ref[...] = jnp.exp(dm / tau)


def _pick_block_rows(n, d, vmem_budget_bytes=8 << 20, max_block=512):
    """Largest multiple-of-8 divisor of n whose working set fits the budget."""
    best = None
    b = 8
    while b <= min(n, max_block):
        if n % b == 0:
            # 2 inputs x 2 pipeline buffers x (b, d) f32  +  ~4 (b, b) f32 temps
            need = 2 * 2 * b * d * 4 + 4 * b * b * 4
            if need <= vmem_budget_bytes:
                best = b
        b += 8
    return best if best is not None else n   # tiny / awkward n: single tile


def contrastive_loss(xi, xj, tau=1.0, normalize=True, block_n=None):
    """Pallas TPU implementation of contrastive_loss.forward — returns scalar loss."""
    N, D = xi.shape
    assert xj.shape == (N, D), (xi.shape, xj.shape)
    tau = float(tau)

    if block_n is None:
        block_n = _pick_block_rows(N, D)
    assert N % block_n == 0, "block_n must divide the batch size"
    n_tiles = N // block_n

    emb_i_spec = pl.BlockSpec((block_n, D), lambda i, j: (i, 0))
    emb_j_spec = pl.BlockSpec((block_n, D), lambda i, j: (j, 0))
    col_spec = pl.BlockSpec((block_n, 1), lambda i, j: (i, 0))   # resident over j

    row_sum, match = pl.pallas_call(
        functools.partial(_contrastive_kernel, tau=tau, normalize=bool(normalize)),
        out_shape=(
            jax.ShapeDtypeStruct((N, 1), jnp.float32),
            jax.ShapeDtypeStruct((N, 1), jnp.float32),
        ),
        grid_spec=pltpu.PrefetchScalarGridSpec(
            num_scalar_prefetch=0,
            grid=(n_tiles, n_tiles),
            in_specs=[emb_i_spec, emb_j_spec],
            out_specs=[col_spec, col_spec],
        ),
        compiler_params=pltpu.CompilerParams(
            # Row tiles are independent (shardable across v7x's 2 TensorCores);
            # the column axis accumulates into the resident row_sum output.
            dimension_semantics=("parallel", "arbitrary"),
        ),
    )(xi, xj)

    row_sum = row_sum[:, 0]
    match = match[:, 0]
    norm_sum = jnp.exp(jnp.float32(1.0) / tau)          # torch.exp(ones(N) / tau)
    per_row = -jnp.log(match / (row_sum - norm_sum))    # (N,)
    # torch.cat((sim_match, sim_match)) duplicates every term; with the per-row
    # divisor tiled alongside it the mean over 2N equals the mean over N.
    return jnp.mean(jnp.concatenate([per_row, per_row], axis=0))


def _reference(xi, xj, tau=1.0, normalize=True):
    """Pure-JAX transcription of the PyTorch forward (for verification)."""
    sim_mat = xi @ xj.T
    if normalize:
        ni = jnp.sqrt(jnp.sum(xi * xi, axis=1))
        nj = jnp.sqrt(jnp.sum(xj * xj, axis=1))
        sim_mat = sim_mat / jnp.maximum(ni[:, None] * nj[None, :], 1e-16)
    sim_mat = jnp.exp(sim_mat / tau)
    if normalize:
        match = jnp.exp(jnp.sum(xi * xj, axis=1) / (ni * nj) / tau)
    else:
        match = jnp.exp(jnp.sum(xi * xj, axis=1) / tau)
    match = jnp.concatenate([match, match], axis=0)
    denom = jnp.sum(sim_mat, axis=1) - jnp.exp(1.0 / tau)
    denom = jnp.concatenate([denom, denom], axis=0)
    return jnp.mean(-jnp.log(match / denom))


if __name__ == "__main__":
    N, D = 16, 32   # batch of paired embeddings xi, xj : (N, D)
    key = jax.random.PRNGKey(0)
    ki, kj = jax.random.split(key)
    # Small-integer embeddings keep MXU/XLA matmuls bit-exact for a tight check.
    xi = jax.random.randint(ki, (N, D), -2, 3).astype(jnp.float32)
    xj = jax.random.randint(kj, (N, D), -2, 3).astype(jnp.float32)

    # 1) default config (normalize=True, tau=1), auto tile size
    loss = jax.block_until_ready(contrastive_loss(xi, xj))
    ref = _reference(xi, xj)
    assert jnp.allclose(loss, ref, rtol=1e-4, atol=1e-4), (loss, ref)

    # 2) tiled path: 2x2 grid exercises column accumulation + diagonal masking
    loss_t = jax.block_until_ready(contrastive_loss(xi, xj, tau=0.5, block_n=8))
    ref_t = _reference(xi, xj, tau=0.5)
    assert jnp.allclose(loss_t, ref_t, rtol=1e-4, atol=1e-4), (loss_t, ref_t)

    # 3) unnormalized branch
    loss_u = jax.block_until_ready(
        contrastive_loss(xi, xj, tau=4.0, normalize=False, block_n=8))
    ref_u = _reference(xi, xj, tau=4.0, normalize=False)
    assert jnp.allclose(loss_u, ref_u, rtol=1e-4, atol=1e-4), (loss_u, ref_u)

    print("KERNEL_OK")
</pallas_src>

<mosaic_0001>
module attributes {stable_mosaic.version = 11 : i64} {
  func.func @_contrastive_kernel(%arg0: i32, %arg1: i32, %arg2: memref<16x32xf32, #tpu.memory_space<vmem>>, %arg3: memref<16x32xf32, #tpu.memory_space<vmem>>, %arg4: memref<16x1xf32, #tpu.memory_space<vmem>>, %arg5: memref<16x1xf32, #tpu.memory_space<vmem>>) attributes {dimension_semantics = [#tpu.dimension_semantics<parallel>, #tpu.dimension_semantics<arbitrary>], iteration_bounds = array<i64: 1, 1>, scalar_prefetch = 0 : i64, scratch_operands = 0 : i64, tpu.core_type = #tpu.core_type<tc>, window_params = [{transform_indices = @transform_0, window_bounds = array<i64: 16, 32>}, {transform_indices = @transform_1, window_bounds = array<i64: 16, 32>}, {transform_indices = @transform_2, window_bounds = array<i64: 16, 1>}, {transform_indices = @transform_3, window_bounds = array<i64: 16, 1>}]} {
    %c0 = arith.constant 0 : index
    %c0_0 = arith.constant 0 : index
    %0 = vector.load %arg2[%c0, %c0_0] : memref<16x32xf32, #tpu.memory_space<vmem>>, vector<16x32xf32>
    %c0_1 = arith.constant 0 : index
    %c0_2 = arith.constant 0 : index
    %1 = vector.load %arg3[%c0_1, %c0_2] : memref<16x32xf32, #tpu.memory_space<vmem>>, vector<16x32xf32>
    %cst = arith.constant dense<0.000000e+00> : vector<16x16xf32>
    %2 = tpu.matmul %0, %1, %cst {dimension_numbers = #tpu.dot_dimension_numbers<[1], [1], [0], [0], [0, 0, 1, 0], [], []>} : vector<16x32xf32>, vector<16x32xf32>, vector<16x16xf32> -> vector<16x16xf32>
    %3 = arith.mulf %0, %0 : vector<16x32xf32>
    %cst_3 = arith.constant dense<0.000000e+00> : vector<16xf32>
    %4 = vector.multi_reduction <add>, %3, %cst_3 [1] : vector<16x32xf32> to vector<16xf32>
    %5 = vector.shape_cast %4 : vector<16xf32> to vector<16x1xf32>
    %6 = math.sqrt %5 : vector<16x1xf32>
    %7 = arith.mulf %1, %1 : vector<16x32xf32>
    %cst_4 = arith.constant dense<0.000000e+00> : vector<16xf32>
    %8 = vector.multi_reduction <add>, %7, %cst_4 [1] : vector<16x32xf32> to vector<16xf32>
    %9 = vector.shape_cast %8 : vector<16xf32> to vector<16x1xf32>
    %10 = math.sqrt %9 : vector<16x1xf32>
    %cst_5 = arith.constant dense<0.000000e+00> : vector<16x16xf32>
    %11 = tpu.matmul %6, %10, %cst_5 {dimension_numbers = #tpu.dot_dimension_numbers<[1], [1], [0], [0], [0, 0, 1, 0], [], []>} : vector<16x1xf32>, vector<16x1xf32>, vector<16x16xf32> -> vector<16x16xf32>
    %cst_6 = arith.constant 1.000000e-16 : f32
    %12 = vector.broadcast %cst_6 : f32 to vector<16x16xf32>
    %13 = arith.maximumf %11, %12 : vector<16x16xf32>
    %14 = arith.divf %2, %13 : vector<16x16xf32>
    %cst_7 = arith.constant 1.000000e+00 : f32
    %15 = vector.broadcast %cst_7 : f32 to vector<16x16xf32>
    %16 = arith.divf %14, %15 : vector<16x16xf32>
    %17 = math.exp %16 : vector<16x16xf32>
    %c0_i32 = arith.constant 0 : i32
    %18 = arith.cmpi eq, %arg1, %c0_i32 : i32
    %19 = arith.extui %18 : i1 to i32
    %c0_i32_8 = arith.constant 0 : i32
    %20 = arith.cmpi ne, %19, %c0_i32_8 : i32
    scf.if %20 {
      %cst_15 = arith.constant 0.000000e+00 : f32
      %29 = vector.broadcast %cst_15 : f32 to vector<16x1xf32>
      %c0_16 = arith.constant 0 : index
      %c0_17 = arith.constant 0 : index
      %30 = vector.load %arg4[%c0_16, %c0_17] : memref<16x1xf32, #tpu.memory_space<vmem>>, vector<16x1xf32>
      tpu.vector_store %arg4[%c0_16, %c0_17], %29 {strides = array<i32>} : memref<16x1xf32, #tpu.memory_space<vmem>>, vector<16x1xf32>,
    } else {
    }
    %c0_9 = arith.constant 0 : index
    %c0_10 = arith.constant 0 : index
    %21 = vector.load %arg4[%c0_9, %c0_10] : memref<16x1xf32, #tpu.memory_space<vmem>>, vector<16x1xf32>
    %cst_11 = arith.constant dense<0.000000e+00> : vector<16xf32>
    %22 = vector.multi_reduction <add>, %17, %cst_11 [1] : vector<16x16xf32> to vector<16xf32>
    %23 = vector.shape_cast %22 : vector<16xf32> to vector<16x1xf32>
    %24 = arith.addf %21, %23 : vector<16x1xf32>
    %c0_12 = arith.constant 0 : index
    %c0_13 = arith.constant 0 : index
    %25 = vector.load %arg4[%c0_12, %c0_13] : memref<16x1xf32, #tpu.memory_space<vmem>>, vector<16x1xf32>
    tpu.vector_store %arg4[%c0_12, %c0_13], %24 {strides = array<i32>} : memref<16x1xf32, #tpu.memory_space<vmem>>, vector<16x1xf32>,
    %26 = arith.cmpi eq, %arg1, %arg0 : i32
    %27 = arith.extui %26 : i1 to i32
    %c0_i32_14 = arith.constant 0 : i32
    %28 = arith.cmpi ne, %27, %c0_i32_14 : i32
    scf.if %28 {
      %29 = arith.mulf %0, %1 : vector<16x32xf32>
      %cst_15 = arith.constant dense<0.000000e+00> : vector<16xf32>
      %30 = vector.multi_reduction <add>, %29, %cst_15 [1] : vector<16x32xf32> to vector<16xf32>
      %31 = vector.shape_cast %30 : vector<16xf32> to vector<16x1xf32>
      %32 = arith.mulf %6, %10 : vector<16x1xf32>
      %33 = arith.divf %31, %32 : vector<16x1xf32>
      %cst_16 = arith.constant 1.000000e+00 : f32
      %34 = vector.broadcast %cst_16 : f32 to vector<16x1xf32>
      %35 = arith.divf %33, %34 : vector<16x1xf32>
      %36 = math.exp %35 : vector<16x1xf32>
      %c0_17 = arith.constant 0 : index
      %c0_18 = arith.constant 0 : index
      %37 = vector.load %arg5[%c0_17, %c0_18] : memref<16x1xf32, #tpu.memory_space<vmem>>, vector<16x1xf32>
      tpu.vector_store %arg5[%c0_17, %c0_18], %36 {strides = array<i32>} : memref<16x1xf32, #tpu.memory_space<vmem>>, vector<16x1xf32>,
    } else {
    }
    return
  }
  func.func @transform_0(%arg0: i32, %arg1: i32) -> (i32, i32) {
    %c0_i32 = arith.constant 0 : i32
    %c0_i32_0 = arith.constant 0 : i32
    return %arg0, %c0_i32 : i32, i32
  }
  func.func @transform_1(%arg0: i32, %arg1: i32) -> (i32, i32) {
    %c0_i32 = arith.constant 0 : i32
    %c0_i32_0 = arith.constant 0 : i32
    return %arg1, %c0_i32 : i32, i32
  }
  func.func @transform_2(%arg0: i32, %arg1: i32) -> (i32, i32) {
    %c0_i32 = arith.constant 0 : i32
    %c0_i32_0 = arith.constant 0 : i32
    return %arg0, %c0_i32 : i32, i32
  }
  func.func @transform_3(%arg0: i32, %arg1: i32) -> (i32, i32) {
    %c0_i32 = arith.constant 0 : i32
    %c0_i32_0 = arith.constant 0 : i32
    return %arg0, %c0_i32 : i32, i32
  }
}

</mosaic_0001>

<llo_original>
// kernel: tpu_custom_call.1
$region0: #{tpu_custom_call.1}
  #allocation0 [shape = 'u32[]', space=smem, size = 0x4, offset = 0x4, fixed_abs, tag = 'smem constant byte address 0x4 - core index']
  #allocation1 [shape = 'u32[144,128]{1,0:T(1,128)}', space=vmem, size = 0x12000, scoped, tag = 'internal scratch']
  %s0 = inlined_call_operand.hbm [shape: f32[16,32], index: 0, kind: input, shape index: {}]
  %s1 = inlined_call_operand.hbm [shape: f32[16,32], index: 1, kind: input, shape index: {}]
  %s2 = inlined_call_operand.vmem [shape: f32[16,1], index: 2, kind: output, shape index: {0}]
  %s3 = inlined_call_operand.vmem [shape: f32[16,1], index: 3, kind: output, shape index: {1}]
  %4 = xla_tuple %s2, %s3
  %s5 = sld [smem:[#allocation0]]
  $region42: #{tpu_custom_call.1} parent=0
    _
  %s7 = ssub.s32 1, %s5
  %s8 = scalar_select 0, %s7, %s5
  $region1: #{tpu_custom_call.1} parent=0
    #allocation2 [shape = 'u8[8192]{0}', space=vmem, size = 0x2000, scoped, tag = 'input window, operand 0, single buffered']
    #allocation3 [shape = 's32[1]{0}', space=sflag, size = 0x4, scoped, tag = 'scoped memory for tpu_custom_call.1']
    #allocation4 [shape = 'u8[8192]{0}', space=vmem, size = 0x2000, scoped, tag = 'input window, operand 1, single buffered']
    #allocation5 [shape = 's32[1]{0}', space=sflag, size = 0x4, scoped, tag = 'scoped memory for tpu_custom_call.1']
    %9 = vsyncpa [#allocation3], 0
    %10 = vsyncpa [#allocation5], 0
    // Predicated region
    $region2: #{tpu_custom_call.1} parent=1 // pred_check
      _
    $region3: #{tpu_custom_call.1} parent=1 // pred_check_branch
      %12 = sbr.rel (0) target = $region5
    $region4: #{tpu_custom_call.1} parent=1 // pred_region
      %s14 = ssub.s32 256, 256
      %15 = vsyncadd [#allocation3], %s14
      %s16 = sshll.u32 [#allocation2], 4
      %s17 = int_to_ptr.vmem [resolvable:$true] %s16
      %22 = dma.hbm_to_vmem [thread:$0]  %s0, 256, %s17, [#allocation3], 128, 128, 8
    $region5: #{tpu_custom_call.1} parent=1 // pred_fallthru
      _
    // Predicated region
    $region6: #{tpu_custom_call.1} parent=1 // pred_check
      _
    $region7: #{tpu_custom_call.1} parent=1 // pred_check_branch
      %24 = sbr.rel (0) target = $region9
    $region8: #{tpu_custom_call.1} parent=1 // pred_region
      %s26 = ssub.s32 256, 256
      %27 = vsyncadd [#allocation5], %s26
      %s28 = sshll.u32 [#allocation4], 4
      %s29 = int_to_ptr.vmem [resolvable:$true] %s28
      %34 = dma.hbm_to_vmem [thread:$0]  %s1, 256, %s29, [#allocation5], 128, 128, 8
    $region9: #{tpu_custom_call.1} parent=1 // pred_fallthru
      _
    // Predicated region
    $region10: #{tpu_custom_call.1} parent=1 // pred_check
      _
    $region11: #{tpu_custom_call.1} parent=1 // pred_check_branch
      %36 = sbr.rel (0) target = $region13
    $region12: #{tpu_custom_call.1} parent=1 // pred_region
      %37 = dma.done [#allocation3], 256
    $region13: #{tpu_custom_call.1} parent=1 // pred_fallthru
      _
    // Predicated region
    $region14: #{tpu_custom_call.1} parent=1 // pred_check
      _
    $region15: #{tpu_custom_call.1} parent=1 // pred_check_branch
      %39 = sbr.rel (0) target = $region17
    $region16: #{tpu_custom_call.1} parent=1 // pred_region
      %40 = dma.done [#allocation5], 256
    $region17: #{tpu_custom_call.1} parent=1 // pred_fallthru
      _
    %v41 = vld [vmem:[#allocation2] sm:$0xff]
    %v42 = vld [vmem:[#allocation2 + $0x8] sm:$0xff]
    %v43 = vld [vmem:[#allocation4] sm:$0xff]
    %v44 = vld [vmem:[#allocation4 + $0x8] sm:$0xff]
    %vm45 = vcmask 261120
    %v47 = vsel %vm45, %v41, 0
    %v50 = vsel %vm45, %v42, 0
    %v53 = vsel %vm45, %v43, 0
    %v56 = vsel %vm45, %v44, 0
    %58 = vmatprep.subr.mxu0 0.0
    %59 = vmatpush1.xpose.msra.mxu0 %v53
    %60 = vmatprep.subr.mxu0 0.0
    %61 = vmatpush1.xpose.msra.mxu0 %v56
    %62 = vmatprep.subr.mxu0 0.0
    %63 = vmatpush1.xpose.msra.mxu0 0.0
    %64 = vmatprep.subr.mxu0 0.0
    %65 = vmatpush1.xpose.msra.mxu0 0.0
    %66 = vmatprep.subr.mxu0 0.0
    %67 = vmatpush1.xpose.msra.mxu0 0.0
    %68 = vmatprep.subr.mxu0 0.0
    %69 = vmatpush1.xpose.msra.mxu0 0.0
    %70 = vmatprep.subr.mxu0 0.0
    %71 = vmatpush1.xpose.msra.mxu0 0.0
    %72 = vmatprep.subr.mxu0 0.0
    %73 = vmatpush1.xpose.msra.mxu0 0.0
    %74 = vmatprep.subr.mxu0 0.0
    %75 = vmatpush1.xpose.msra.mxu0 0.0
    %76 = vmatprep.subr.mxu0 0.0
    %77 = vmatpush1.xpose.msra.mxu0 0.0
    %78 = vmatprep.subr.mxu0 0.0
    %79 = vmatpush1.xpose.msra.mxu0 0.0
    %80 = vmatprep.subr.mxu0 0.0
    %81 = vmatpush1.xpose.msra.mxu0 0.0
    %82 = vmatprep.subr.mxu0 0.0
    %83 = vmatpush1.xpose.msra.mxu0 0.0
    %84 = vmatprep.subr.mxu0 0.0
    %85 = vmatpush1.xpose.msra.mxu0 0.0
    %86 = vmatprep.subr.mxu0 0.0
    %87 = vmatpush1.xpose.msra.mxu0 0.0
    %88 = vmatprep.subr.mxu0 0.0
    %89 = vmatpush1.xpose.msra.mxu0 0.0
    %90 = vmatprep.subr.mxu0 0.0
    %91 = vmatpush1.xpose.msra.mxu0 0.0
    %92 = vmatprep.subr.mxu0 0.0
    %93 = vmatpush1.xpose.msra.mxu0 0.0
    %94 = vmatprep.subr.mxu0 0.0
    %95 = vmatpush1.xpose.msra.mxu0 0.0
    %96 = vmatprep.subr.mxu0 0.0
    %97 = vmatpush1.xpose.msra.mxu0 0.0
    %98 = vmatprep.subr.mxu0 0.0
    %99 = vmatpush1.xpose.msra.mxu0 0.0
    %100 = vmatprep.subr.mxu0 0.0
    %101 = vmatpush1.xpose.msra.mxu0 0.0
    %102 = vmatprep.subr.mxu0 0.0
    %103 = vmatpush1.xpose.msra.mxu0 0.0
    %104 = vmatprep.subr.mxu0 0.0
    %105 = vmatpush1.xpose.msra.mxu0 0.0
    %106 = vmatprep.subr.mxu0 0.0
    %107 = vmatpush1.xpose.msra.mxu0 0.0
    %108 = vmatprep.subr.mxu0 0.0
    %109 = vmatpush1.xpose.msra.mxu0 0.0
    %110 = vmatprep.subr.mxu0 0.0
    %111 = vmatpush1.xpose.msra.mxu0 0.0
    %112 = vmatprep.subr.mxu0 0.0
    %113 = vmatpush1.xpose.msra.mxu0 0.0
    %114 = vmatprep.subr.mxu0 0.0
    %115 = vmatpush1.xpose.msra.mxu0 0.0
    %116 = vmatprep.subr.mxu0 0.0
    %117 = vmatpush1.xpose.msra.mxu0 0.0
    %118 = vmatprep.subr.mxu0 0.0
    %119 = vmatpush1.xpose.msra.mxu0 0.0
    %120 = vmatprep.subr.mxu0 0.0
    %121 = vmatpush1.xpose.msra.mxu0 0.0
    %122 = vmatprep.mubr.f32.mxu0 0.0
    %123 = vmatmul.mubr.f32.gmra.mrb[0].mxu0 %v47
    %v124 = vpop.f32.mrb[0].mxu0
    %v125 = vadd.f32 0.0, %v124
    %v126 = vpop.f32.mrb[0].mxu0
    %127 = vmatprep.mubr.f32.mxu0 0.0
    %128 = vmatmul.mubr.f32.gmra.mrb[0].mxu0 %v50
    %v129 = vpop.f32.mrb[0].mxu0
    %v130 = vadd.f32 0.0, %v129
    %v131 = vpop.f32.mrb[0].mxu0
    %132 = vdwg.mxu0
    %v133 = vmul.f32 %v41, %v41
    %v134 = vmul.f32 %v42, %v42
    %v135 = vsel %vm45, %v133, 0.0
    %136 = vadd.xlane.f32.xlu0 %v135
    %v137 = vpop.xlane.xlu0 %136
    %v138 = vsel %vm45, %v134, 0.0
    %139 = vadd.xlane.f32.xlu0 %v138
    %v140 = vpop.xlane.xlu0 %139
    %v141 = vrsqrt.pop %v137
    %v142 = vmul.f32 %v137, %v141
    %vm143 = vcmp.eq.f32.partialorder %v137, inf
    %v144 = vsel %vm143, %v137, %v142
    %vm145 = vcmp.eq.f32.partialorder %v137, 0.0
    %v146 = vand.u32 %v137, 2147483648
    %v147 = vsel %vm145, %v146, %v144
    %v148 = vrsqrt.pop %v140
    %v149 = vmul.f32 %v140, %v148
    %vm150 = vcmp.eq.f32.partialorder %v140, inf
    %v151 = vsel %vm150, %v140, %v149
    %vm152 = vcmp.eq.f32.partialorder %v140, 0.0
    %v153 = vand.u32 %v140, 2147483648
    %v154 = vsel %vm152, %v153, %v151
    %v155 = vmul.f32 %v43, %v43
    %v156 = vmul.f32 %v44, %v44
    %v157 = vsel %vm45, %v155, 0.0
    %158 = vadd.xlane.f32.xlu0 %v157
    %v159 = vpop.xlane.xlu0 %158
    %v160 = vsel %vm45, %v156, 0.0
    %161 = vadd.xlane.f32.xlu0 %v160
    %v162 = vpop.xlane.xlu0 %161
    %v163 = vrsqrt.pop %v159
    %v164 = vmul.f32 %v159, %v163
    %vm165 = vcmp.eq.f32.partialorder %v159, inf
    %v166 = vsel %vm165, %v159, %v164
    %vm167 = vcmp.eq.f32.partialorder %v159, 0.0
    %v168 = vand.u32 %v159, 2147483648
    %v169 = vsel %vm167, %v168, %v166
    %v170 = vrsqrt.pop %v162
    %v171 = vmul.f32 %v162, %v170
    %vm172 = vcmp.eq.f32.partialorder %v162, inf
    %v173 = vsel %vm172, %v162, %v171
    %vm174 = vcmp.eq.f32.partialorder %v162, 0.0
    %v175 = vand.u32 %v162, 2147483648
    %v176 = vsel %vm174, %v175, %v173
    %vm177 = vcmask 7168
    %v179 = vsel %vm177, %v147, 0
    %v182 = vsel %vm177, %v154, 0
    %v185 = vsel %vm177, %v169, 0
    %v188 = vsel %vm177, %v176, 0
    %190 = vmatprep.subr.mxu0 0.0
    %191 = vmatpush1.xpose.msra.mxu0 %v185
    %192 = vmatprep.subr.mxu0 0.0
    %193 = vmatpush1.xpose.msra.mxu0 %v188
    %194 = vmatprep.subr.mxu0 0.0
    %195 = vmatpush1.xpose.msra.mxu0 0.0
    %196 = vmatprep.subr.mxu0 0.0
    %197 = vmatpush1.xpose.msra.mxu0 0.0
    %198 = vmatprep.subr.mxu0 0.0
    %199 = vmatpush1.xpose.msra.mxu0 0.0
    %200 = vmatprep.subr.mxu0 0.0
    %201 = vmatpush1.xpose.msra.mxu0 0.0
    %202 = vmatprep.subr.mxu0 0.0
    %203 = vmatpush1.xpose.msra.mxu0 0.0
    %204 = vmatprep.subr.mxu0 0.0
    %205 = vmatpush1.xpose.msra.mxu0 0.0
    %206 = vmatprep.subr.mxu0 0.0
    %207 = vmatpush1.xpose.msra.mxu0 0.0
    %208 = vmatprep.subr.mxu0 0.0
    %209 = vmatpush1.xpose.msra.mxu0 0.0
    %210 = vmatprep.subr.mxu0 0.0
    %211 = vmatpush1.xpose.msra.mxu0 0.0
    %212 = vmatprep.subr.mxu0 0.0
    %213 = vmatpush1.xpose.msra.mxu0 0.0
    %214 = vmatprep.subr.mxu0 0.0
    %215 = vmatpush1.xpose.msra.mxu0 0.0
    %216 = vmatprep.subr.mxu0 0.0
    %217 = vmatpush1.xpose.msra.mxu0 0.0
    %218 = vmatprep.subr.mxu0 0.0
    %219 = vmatpush1.xpose.msra.mxu0 0.0
    %220 = vmatprep.subr.mxu0 0.0
    %221 = vmatpush1.xpose.msra.mxu0 0.0
    %222 = vmatprep.subr.mxu0 0.0
    %223 = vmatpush1.xpose.msra.mxu0 0.0
    %224 = vmatprep.subr.mxu0 0.0
    %225 = vmatpush1.xpose.msra.mxu0 0.0
    %226 = vmatprep.subr.mxu0 0.0
    %227 = vmatpush1.xpose.msra.mxu0 0.0
    %228 = vmatprep.subr.mxu0 0.0
    %229 = vmatpush1.xpose.msra.mxu0 0.0
    %230 = vmatprep.subr.mxu0 0.0
    %231 = vmatpush1.xpose.msra.mxu0 0.0
    %232 = vmatprep.subr.mxu0 0.0
    %233 = vmatpush1.xpose.msra.mxu0 0.0
    %234 = vmatprep.subr.mxu0 0.0
    %235 = vmatpush1.xpose.msra.mxu0 0.0
    %236 = vmatprep.subr.mxu0 0.0
    %237 = vmatpush1.xpose.msra.mxu0 0.0
    %238 = vmatprep.subr.mxu0 0.0
    %239 = vmatpush1.xpose.msra.mxu0 0.0
    %240 = vmatprep.subr.mxu0 0.0
    %241 = vmatpush1.xpose.msra.mxu0 0.0
    %242 = vmatprep.subr.mxu0 0.0
    %243 = vmatpush1.xpose.msra.mxu0 0.0
    %244 = vmatprep.subr.mxu0 0.0
    %245 = vmatpush1.xpose.msra.mxu0 0.0
    %246 = vmatprep.subr.mxu0 0.0
    %247 = vmatpush1.xpose.msra.mxu0 0.0
    %248 = vmatprep.subr.mxu0 0.0
    %249 = vmatpush1.xpose.msra.mxu0 0.0
    %250 = vmatprep.subr.mxu0 0.0
    %251 = vmatpush1.xpose.msra.mxu0 0.0
    %252 = vmatprep.subr.mxu0 0.0
    %253 = vmatpush1.xpose.msra.mxu0 0.0
    %254 = vmatprep.mubr.f32.mxu0 0.0
    %255 = vmatmul.mubr.f32.gmra.mrb[0].mxu0 %v179
    %v256 = vpop.f32.mrb[0].mxu0
    %v257 = vadd.f32 0.0, %v256
    %v258 = vpop.f32.mrb[0].mxu0
    %259 = vmatprep.mubr.f32.mxu0 0.0
    %260 = vmatmul.mubr.f32.gmra.mrb[0].mxu0 %v182
    %v261 = vpop.f32.mrb[0].mxu0
    %v262 = vadd.f32 0.0, %v261
    %v263 = vpop.f32.mrb[0].mxu0
    %264 = vdwg.mxu0
    %v265 = vmax.f32 %v257, 1e-16
    %v266 = vmax.f32 %v262, 1e-16
    %v267 = vrcp.pop %v265
    %v268 = vmul.f32 %v125, %v267
    %v269 = vrcp.pop %v266
    %v270 = vmul.f32 %v130, %v269
    %v271 = vmul.f32 %v268, 1.442695
    %v272 = vpow.pop %v271
    %v273 = vmul.f32 %v270, 1.442695
    %v274 = vpow.pop %v273
    %p275 = scmp.eq.s32.totalorder 0, 0
    // Predicated region
    $region18: #{tpu_custom_call.1} parent=1 // pred_check
      %p276 = pneg %p275
    $region19: #{tpu_custom_call.1} parent=1 // pred_check_branch
      %278 = sbr.rel (%p276) target = $region21
    $region20: #{tpu_custom_call.1} parent=1 // pred_region
      %279 = vst.msk [vmem:[%s2] sm:$0xff] %vm177, 0.0
      %280 = vst.msk [vmem:[%s2 + $0x8] sm:$0xff] %vm177, 0.0
    $region21: #{tpu_custom_call.1} parent=1 // pred_fallthru
      _
    %v281 = vld [vmem:[%s2] sm:$0xff]
    %v282 = vld [vmem:[%s2 + $0x8] sm:$0xff]
    %vm283 = vcmask 130048
    %v284 = vsel %vm283, %v272, 0.0
    %285 = vadd.xlane.f32.xlu0 %v284
    %v286 = vpop.xlane.xlu0 %285
    %v287 = vsel %vm283, %v274, 0.0
    %288 = vadd.xlane.f32.xlu0 %v287
    %v289 = vpop.xlane.xlu0 %288
    %v290 = vadd.f32 %v281, %v286
    %v291 = vadd.f32 %v282, %v289
    %292 = vst.msk [vmem:[%s2] sm:$0xff] %vm177, %v290
    %293 = vst.msk [vmem:[%s2 + $0x8] sm:$0xff] %vm177, %v291
    %p294 = scmp.eq.s32.totalorder 0, 0
    // Predicated region
    $region22: #{tpu_custom_call.1} parent=1 // pred_check
      %p295 = pneg %p294
    $region23: #{tpu_custom_call.1} parent=1 // pred_check_branch
      %297 = sbr.rel (%p295) target = $region25
    $region24: #{tpu_custom_call.1} parent=1 // pred_region
      %v298 = vmul.f32 %v41, %v43
      %v299 = vmul.f32 %v42, %v44
      %v300 = vsel %vm45, %v298, 0.0
      %301 = vadd.xlane.f32.xlu0 %v300
      %v302 = vpop.xlane.xlu0 %301
      %v303 = vsel %vm45, %v299, 0.0
      %304 = vadd.xlane.f32.xlu0 %v303
      %v305 = vpop.xlane.xlu0 %304
      %v306 = vmul.f32 %v147, %v169
      %v307 = vmul.f32 %v154, %v176
      %v308 = vrcp.pop %v306
      %v309 = vmul.f32 %v302, %v308
      %v310 = vrcp.pop %v307
      %v311 = vmul.f32 %v305, %v310
      %v312 = vmul.f32 %v309, 1.442695
      %v313 = vpow.pop %v312
      %v314 = vmul.f32 %v311, 1.442695
      %v315 = vpow.pop %v314
      %316 = vst.msk [vmem:[%s3] sm:$0xff] %vm177, %v313
      %317 = vst.msk [vmem:[%s3 + $0x8] sm:$0xff] %vm177, %v315
    $region25: #{tpu_custom_call.1} parent=1 // pred_fallthru
      _
    // Predicated region
    $region26: #{tpu_custom_call.1} parent=1 // pred_check
      _
    $region27: #{tpu_custom_call.1} parent=1 // pred_check_branch
      %319 = sbr.rel (0) target = $region29
    $region28: #{tpu_custom_call.1} parent=1 // pred_region
      _
    $region29: #{tpu_custom_call.1} parent=1 // pred_fallthru
      _
    // Predicated region
    $region30: #{tpu_custom_call.1} parent=1 // pred_check
      _
    $region31: #{tpu_custom_call.1} parent=1 // pred_check_branch
      %321 = sbr.rel (0) target = $region33
    $region32: #{tpu_custom_call.1} parent=1 // pred_region
      _
    $region33: #{tpu_custom_call.1} parent=1 // pred_fallthru
      _
    // Predicated region
    $region34: #{tpu_custom_call.1} parent=1 // pred_check
      _
    $region35: #{tpu_custom_call.1} parent=1 // pred_check_branch
      %323 = sbr.rel (0) target = $region37
    $region36: #{tpu_custom_call.1} parent=1 // pred_region
      _
    $region37: #{tpu_custom_call.1} parent=1 // pred_fallthru
      _
    // Predicated region
    $region38: #{tpu_custom_call.1} parent=1 // pred_check
      _
    $region39: #{tpu_custom_call.1} parent=1 // pred_check_branch
      %325 = sbr.rel (0) target = $region41
    $region40: #{tpu_custom_call.1} parent=1 // pred_region
      _
    $region41: #{tpu_custom_call.1} parent=1 // pred_fallthru
      _
    %326 = vsyncpa [#allocation3], 1
    %327 = vsyncpa [#allocation5], 1

</llo_original>
